<compile_context>
chip_gen: v6e
topology: v6e:2x2x1
jax: 0.10.0
libtpu: 0.0.40
codegen_flags: <defaults>
</compile_context>

<pallas_src>
import jax
import jax.numpy as jnp
from jax.experimental import pallas as pl
from jax.experimental.pallas import tpu as pltpu


def unreferenced_kernel(q_ref, g_ref, wa_ref, w2_ref, w3_ref, b3_ref, bias_ref,
                        out_ref):
    f32 = jnp.float32

    q = q_ref[...]                       # [TB, E]
    g = g_ref[...]                       # [TB, E]
    wa = wa_ref[...]                     # [2E, E+H1]  fused stage-1 weights
    vec = bias_ref[...]                  # [8, PW]     packed small row-vectors

    E = q.shape[1]
    H1 = w2_ref.shape[0]
    H2 = w2_ref.shape[1]

    bm = vec[0:1, :E]                    # [1, E]
    w1quad = vec[1:2, :H1]               # [1, H1]  (W1 column for the `quad` feature)
    b1 = vec[2:3, :H1]                   # [1, H1]
    b2 = vec[3:4, :H2]                   # [1, H2]

    # Fused stage 1:  [q | g] @ [[Wm^T, W1q^T], [0, W1g^T]]  -> [TB, E + H1]
    stage1 = (
        jnp.dot(q, wa[:E, :], preferred_element_type=f32)
        + jnp.dot(g, wa[E:, :], preferred_element_type=f32)
    )

    # quad = rowwise_dot(query @ Wm^T + bm, generated)   -> [TB, 1]
    mq = stage1[:, :E] + bm
    quad = jnp.sum(mq * g.astype(f32), axis=1, keepdims=True)

    # hidden1 on cat([query, quad, generated]) with the concat folded away
    h1 = jnp.maximum(stage1[:, E:] + quad * w1quad + b1, 0.0)

    # hidden2
    h2 = jnp.maximum(
        jnp.dot(h1.astype(w2_ref.dtype), w2_ref[...],
                preferred_element_type=f32) + b2,
        0.0,
    )

    # Transposed final layer: W3_pad [8, H2] x h2 [TB, H2] (contract H2) -> [8, TB]
    # Batch lands on the lane axis -> only 8 sublanes written back (L padded to 8).
    out_t = jax.lax.dot_general(
        w3_ref[...], h2.astype(w3_ref.dtype),
        dimension_numbers=(((1,), (1,)), ((), ())),
        preferred_element_type=f32,
    )
    out_ref[...] = (out_t + b3_ref[...]).astype(out_ref.dtype)


def prepare_params(params, *, use_bf16=False):
    """One-time parameter preparation. Do NOT call per forward pass."""
    f32 = jnp.float32
    Wm = jnp.asarray(params["Wm"], f32)   # [E, E]
    bm = jnp.asarray(params["bm"], f32)   # [E]
    W1 = jnp.asarray(params["W1"], f32)   # [H1, 2E+1]
    b1 = jnp.asarray(params["b1"], f32)   # [H1]
    W2 = jnp.asarray(params["W2"], f32)   # [H2, H1]
    b2 = jnp.asarray(params["b2"], f32)   # [H2]
    W3 = jnp.asarray(params["W3"], f32)   # [L, H2]
    b3 = jnp.asarray(params["b3"], f32)   # [L]

    E = Wm.shape[0]
    H1 = W1.shape[0]
    H2 = W2.shape[0]
    L = W3.shape[0]
    assert L <= 8, "num_labels > 8 would need sublane-tiled output packing"
    LPAD = 8                               # sublane pad of the logit axis

    # Stage-1 fused weight block matrix: [2E, E + H1]
    w1q_t = W1[:, :E].T                                              # [E, H1]
    w1g_t = W1[:, E + 1:].T                                          # [E, H1]
    wa = jnp.concatenate(
        [jnp.concatenate([Wm.T, w1q_t], axis=1),
         jnp.concatenate([jnp.zeros((E, E), f32), w1g_t], axis=1)],
        axis=0)                                                      # [2E, E+H1]

    w2 = W2.T                                                        # [H1, H2]

    # Output weights sublane-padded to 8 rows (transposed-output layout).
    w3 = jnp.zeros((LPAD, H2), f32).at[:L, :].set(W3)                # [8, H2]
    b3col = jnp.zeros((LPAD, 1), f32).at[:L, 0].set(b3)              # [8, 1]

    # Pack the remaining small row-vectors into one lane-aligned [8, PW] buffer.
    PW = ((max(128, E, H1, H2) + 127) // 128) * 128
    pack = jnp.zeros((8, PW), f32)
    pack = pack.at[0, :E].set(bm)
    pack = pack.at[1, :H1].set(W1[:, E])      # quad column of W1
    pack = pack.at[2, :H1].set(b1)
    pack = pack.at[3, :H2].set(b2)

    wdtype = jnp.bfloat16 if use_bf16 else f32
    return {
        "wa": wa.astype(wdtype),
        "w2": w2.astype(wdtype),
        "w3": w3.astype(wdtype),
        "b3col": b3col,          # biases stay f32
        "biases": pack,          # biases stay f32
        "dims": {"E": E, "H1": H1, "H2": H2, "L": L, "LPAD": LPAD},
    }


def unreferenced_forward(query, generated, prepared, *, block_b=None):
    """query, generated: [B, E] float32. prepared: output of prepare_params."""
    B, E = query.shape
    dims = prepared["dims"]
    L, LPAD = dims["L"], dims["LPAD"]
    wa, w2, w3, b3c, biases = (
        prepared["wa"], prepared["w2"], prepared["w3"],
        prepared["b3col"], prepared["biases"],
    )

    # Match activation dtype to the (optionally bf16) weights; accumulation is f32.
    if query.dtype != wa.dtype:
        query = query.astype(wa.dtype)
        generated = generated.astype(wa.dtype)

    if block_b is None:
        if B <= 128:
            block_b = B
        else:
            # >= 2 grid steps (v7x megacore sharding + DMA overlap), lane-aligned
            # (multiple of 128 for the transposed-output block), capped at 4096.
            block_b = min(4096, max(128, ((pl.cdiv(B, 2) + 127) // 128) * 128))
    TB = block_b
    grid = (pl.cdiv(B, TB),)

    out_t = pl.pallas_call(
        unreferenced_kernel,
        out_shape=jax.ShapeDtypeStruct((LPAD, B), jnp.float32),   # batch on lanes
        grid=grid,
        in_specs=[
            pl.BlockSpec((TB, E), lambda i: (i, 0)),          # query   (batch-tiled)
            pl.BlockSpec((TB, E), lambda i: (i, 0)),          # generated
            pl.BlockSpec(wa.shape, lambda i: (0, 0)),         # fused stage-1 weights
            pl.BlockSpec(w2.shape, lambda i: (0, 0)),         # hidden2 weights
            pl.BlockSpec(w3.shape, lambda i: (0, 0)),         # padded output weights
            pl.BlockSpec(b3c.shape, lambda i: (0, 0)),        # padded output bias [8,1]
            pl.BlockSpec(biases.shape, lambda i: (0, 0)),     # packed biases
        ],
        out_specs=pl.BlockSpec((LPAD, TB), lambda i: (0, i)),
        compiler_params=pltpu.CompilerParams(
            dimension_semantics=("parallel",)
        ),
    )(query, generated, wa, w2, w3, b3c, biases)

    # Tiny post-op: slice the L real logit rows and restore the PyTorch [B, L] layout.
    return out_t[:L, :].T


def reference_forward(query, generated, params):
    mq = query @ params["Wm"].T + params["bm"]
    quad = jnp.sum(mq * generated, axis=1, keepdims=True)
    h = jnp.concatenate([query, quad, generated], axis=1)
    h1 = jax.nn.relu(h @ params["W1"].T + params["b1"])
    h2 = jax.nn.relu(h1 @ params["W2"].T + params["b2"])
    return h2 @ params["W3"].T + params["b3"]


if __name__ == "__main__":
    # config: embedding_dim=32, hidden1_dim=32, hidden2_dim=16, num_labels=2
    B, E, H1, H2, L = 8, 32, 32, 16, 2

    key = jax.random.PRNGKey(0)
    keys = jax.random.split(key, 10)

    params = {
        "Wm": jax.random.normal(keys[0], (E, E), jnp.float32) * 0.1,
        "bm": jax.random.normal(keys[1], (E,), jnp.float32) * 0.1,
        "W1": jax.random.normal(keys[2], (H1, 2 * E + 1), jnp.float32) * 0.1,
        "b1": jax.random.normal(keys[3], (H1,), jnp.float32) * 0.1,
        "W2": jax.random.normal(keys[4], (H2, H1), jnp.float32) * 0.1,
        "b2": jax.random.normal(keys[5], (H2,), jnp.float32) * 0.1,
        "W3": jax.random.normal(keys[6], (L, H2), jnp.float32) * 0.1,
        "b3": jax.random.normal(keys[7], (L,), jnp.float32) * 0.1,
    }

    query = jax.random.normal(keys[8], (B, E), jnp.float32)
    generated = jax.random.normal(keys[9], (B, E), jnp.float32)

    # One-time parameter prep (hoisted out of the forward call path).
    prepared = jax.tree_util.tree_map(jax.block_until_ready, prepare_params(params))

    out = unreferenced_forward(query, generated, prepared)
    out = jax.block_until_ready(out)

    ref = reference_forward(query, generated, params)
    assert out.shape == (B, L)
    assert jnp.allclose(out, ref, atol=1e-4, rtol=1e-4), (
        f"mismatch: max abs diff = {jnp.max(jnp.abs(out - ref))}"
    )

    print("KERNEL_OK")
</pallas_src>

<mosaic_0001>
module attributes {stable_mosaic.version = 11 : i64} {
  func.func @unreferenced_kernel(%arg0: i32, %arg1: memref<8x32xf32, #tpu.memory_space<vmem>>, %arg2: memref<8x32xf32, #tpu.memory_space<vmem>>, %arg3: memref<64x64xf32, #tpu.memory_space<vmem>>, %arg4: memref<32x16xf32, #tpu.memory_space<vmem>>, %arg5: memref<8x16xf32, #tpu.memory_space<vmem>>, %arg6: memref<8x1xf32, #tpu.memory_space<vmem>>, %arg7: memref<8x128xf32, #tpu.memory_space<vmem>>, %arg8: memref<8x8xf32, #tpu.memory_space<vmem>>) attributes {dimension_semantics = [#tpu.dimension_semantics<parallel>], iteration_bounds = array<i64: 1>, scalar_prefetch = 0 : i64, scratch_operands = 0 : i64, tpu.core_type = #tpu.core_type<tc>, window_params = [{transform_indices = @transform_0, window_bounds = array<i64: 8, 32>}, {transform_indices = @transform_1, window_bounds = array<i64: 8, 32>}, {pipeline_mode = #tpu.pipeline_mode<synchronous>, transform_indices = @transform_2, window_bounds = array<i64: 64, 64>}, {pipeline_mode = #tpu.pipeline_mode<synchronous>, transform_indices = @transform_3, window_bounds = array<i64: 32, 16>}, {pipeline_mode = #tpu.pipeline_mode<synchronous>, transform_indices = @transform_4, window_bounds = array<i64: 8, 16>}, {pipeline_mode = #tpu.pipeline_mode<synchronous>, transform_indices = @transform_5, window_bounds = array<i64: 8, 1>}, {pipeline_mode = #tpu.pipeline_mode<synchronous>, transform_indices = @transform_6, window_bounds = array<i64: 8, 128>}, {transform_indices = @transform_7, window_bounds = array<i64: 8, 8>}]} {
    %c0 = arith.constant 0 : index
    %c0_0 = arith.constant 0 : index
    %0 = vector.load %arg1[%c0, %c0_0] : memref<8x32xf32, #tpu.memory_space<vmem>>, vector<8x32xf32>
    %c0_1 = arith.constant 0 : index
    %c0_2 = arith.constant 0 : index
    %1 = vector.load %arg2[%c0_1, %c0_2] : memref<8x32xf32, #tpu.memory_space<vmem>>, vector<8x32xf32>
    %c0_3 = arith.constant 0 : index
    %c0_4 = arith.constant 0 : index
    %2 = vector.load %arg3[%c0_3, %c0_4] : memref<64x64xf32, #tpu.memory_space<vmem>>, vector<64x64xf32>
    %c0_5 = arith.constant 0 : index
    %c0_6 = arith.constant 0 : index
    %3 = vector.load %arg7[%c0_5, %c0_6] : memref<8x128xf32, #tpu.memory_space<vmem>>, vector<8x128xf32>
    %4 = vector.extract_strided_slice %3 {offsets = [0, 0], sizes = [1, 32], strides = [1, 1]} : vector<8x128xf32> to vector<1x32xf32>
    %5 = vector.extract_strided_slice %3 {offsets = [1, 0], sizes = [1, 32], strides = [1, 1]} : vector<8x128xf32> to vector<1x32xf32>
    %6 = vector.extract_strided_slice %3 {offsets = [2, 0], sizes = [1, 32], strides = [1, 1]} : vector<8x128xf32> to vector<1x32xf32>
    %7 = vector.extract_strided_slice %3 {offsets = [3, 0], sizes = [1, 16], strides = [1, 1]} : vector<8x128xf32> to vector<1x16xf32>
    %8 = vector.extract_strided_slice %2 {offsets = [0, 0], sizes = [32, 64], strides = [1, 1]} : vector<64x64xf32> to vector<32x64xf32>
    %cst = arith.constant dense<0.000000e+00> : vector<8x64xf32>
    %9 = tpu.matmul %0, %8, %cst {dimension_numbers = #tpu.dot_dimension_numbers<[1], [0], [0], [1], [0, 0, 1, 1], [], []>} : vector<8x32xf32>, vector<32x64xf32>, vector<8x64xf32> -> vector<8x64xf32>
    %10 = vector.extract_strided_slice %2 {offsets = [32, 0], sizes = [32, 64], strides = [1, 1]} : vector<64x64xf32> to vector<32x64xf32>
    %cst_7 = arith.constant dense<0.000000e+00> : vector<8x64xf32>
    %11 = tpu.matmul %1, %10, %cst_7 {dimension_numbers = #tpu.dot_dimension_numbers<[1], [0], [0], [1], [0, 0, 1, 1], [], []>} : vector<8x32xf32>, vector<32x64xf32>, vector<8x64xf32> -> vector<8x64xf32>
    %12 = arith.addf %9, %11 : vector<8x64xf32>
    %13 = vector.extract_strided_slice %12 {offsets = [0, 0], sizes = [8, 32], strides = [1, 1]} : vector<8x64xf32> to vector<8x32xf32>
    %14 = vector.broadcast %4 : vector<1x32xf32> to vector<8x32xf32>
    %15 = arith.addf %13, %14 : vector<8x32xf32>
    %16 = arith.mulf %15, %1 : vector<8x32xf32>
    %cst_8 = arith.constant dense<0.000000e+00> : vector<8xf32>
    %17 = vector.multi_reduction <add>, %16, %cst_8 [1] : vector<8x32xf32> to vector<8xf32>
    %18 = vector.shape_cast %17 : vector<8xf32> to vector<8x1xf32>
    %19 = vector.extract_strided_slice %12 {offsets = [0, 32], sizes = [8, 32], strides = [1, 1]} : vector<8x64xf32> to vector<8x32xf32>
    %20 = vector.broadcast %18 : vector<8x1xf32> to vector<8x32xf32>
    %21 = vector.broadcast %5 : vector<1x32xf32> to vector<8x32xf32>
    %22 = arith.mulf %20, %21 : vector<8x32xf32>
    %23 = arith.addf %19, %22 : vector<8x32xf32>
    %24 = vector.broadcast %6 : vector<1x32xf32> to vector<8x32xf32>
    %25 = arith.addf %23, %24 : vector<8x32xf32>
    %cst_9 = arith.constant 0.000000e+00 : f32
    %26 = vector.broadcast %cst_9 : f32 to vector<8x32xf32>
    %27 = arith.maximumf %25, %26 : vector<8x32xf32>
    %c0_10 = arith.constant 0 : index
    %c0_11 = arith.constant 0 : index
    %28 = vector.load %arg4[%c0_10, %c0_11] : memref<32x16xf32, #tpu.memory_space<vmem>>, vector<32x16xf32>
    %cst_12 = arith.constant dense<0.000000e+00> : vector<8x16xf32>
    %29 = tpu.matmul %27, %28, %cst_12 {dimension_numbers = #tpu.dot_dimension_numbers<[1], [0], [0], [1], [0, 0, 1, 1], [], []>} : vector<8x32xf32>, vector<32x16xf32>, vector<8x16xf32> -> vector<8x16xf32>
    %30 = vector.broadcast %7 : vector<1x16xf32> to vector<8x16xf32>
    %31 = arith.addf %29, %30 : vector<8x16xf32>
    %cst_13 = arith.constant 0.000000e+00 : f32
    %32 = vector.broadcast %cst_13 : f32 to vector<8x16xf32>
    %33 = arith.maximumf %31, %32 : vector<8x16xf32>
    %c0_14 = arith.constant 0 : index
    %c0_15 = arith.constant 0 : index
    %34 = vector.load %arg5[%c0_14, %c0_15] : memref<8x16xf32, #tpu.memory_space<vmem>>, vector<8x16xf32>
    %cst_16 = arith.constant dense<0.000000e+00> : vector<8x8xf32>
    %35 = tpu.matmul %34, %33, %cst_16 {dimension_numbers = #tpu.dot_dimension_numbers<[1], [1], [0], [0], [0, 0, 1, 0], [], []>} : vector<8x16xf32>, vector<8x16xf32>, vector<8x8xf32> -> vector<8x8xf32>
    %c0_17 = arith.constant 0 : index
    %c0_18 = arith.constant 0 : index
    %36 = vector.load %arg6[%c0_17, %c0_18] : memref<8x1xf32, #tpu.memory_space<vmem>>, vector<8x1xf32>
    %37 = vector.broadcast %36 : vector<8x1xf32> to vector<8x8xf32>
    %38 = arith.addf %35, %37 : vector<8x8xf32>
    %c0_19 = arith.constant 0 : index
    %c0_20 = arith.constant 0 : index
    %39 = vector.load %arg8[%c0_19, %c0_20] : memref<8x8xf32, #tpu.memory_space<vmem>>, vector<8x8xf32>
    tpu.vector_store %arg8[%c0_19, %c0_20], %38 {strides = array<i32>} : memref<8x8xf32, #tpu.memory_space<vmem>>, vector<8x8xf32>,
    return
  }
  func.func @transform_0(%arg0: i32) -> (i32, i32) {
    %c0_i32 = arith.constant 0 : i32
    %c0_i32_0 = arith.constant 0 : i32
    return %arg0, %c0_i32 : i32, i32
  }
  func.func @transform_1(%arg0: i32) -> (i32, i32) {
    %c0_i32 = arith.constant 0 : i32
    %c0_i32_0 = arith.constant 0 : i32
    return %arg0, %c0_i32 : i32, i32
  }
  func.func @transform_2(%arg0: i32) -> (i32, i32) {
    %c0_i32 = arith.constant 0 : i32
    %c0_i32_0 = arith.constant 0 : i32
    %c0_i32_1 = arith.constant 0 : i32
    return %c0_i32, %c0_i32_0 : i32, i32
  }
  func.func @transform_3(%arg0: i32) -> (i32, i32) {
    %c0_i32 = arith.constant 0 : i32
    %c0_i32_0 = arith.constant 0 : i32
    %c0_i32_1 = arith.constant 0 : i32
    return %c0_i32, %c0_i32_0 : i32, i32
  }
  func.func @transform_4(%arg0: i32) -> (i32, i32) {
    %c0_i32 = arith.constant 0 : i32
    %c0_i32_0 = arith.constant 0 : i32
    %c0_i32_1 = arith.constant 0 : i32
    return %c0_i32, %c0_i32_0 : i32, i32
  }
  func.func @transform_5(%arg0: i32) -> (i32, i32) {
    %c0_i32 = arith.constant 0 : i32
    %c0_i32_0 = arith.constant 0 : i32
    %c0_i32_1 = arith.constant 0 : i32
    return %c0_i32, %c0_i32_0 : i32, i32
  }
  func.func @transform_6(%arg0: i32) -> (i32, i32) {
    %c0_i32 = arith.constant 0 : i32
    %c0_i32_0 = arith.constant 0 : i32
    %c0_i32_1 = arith.constant 0 : i32
    return %c0_i32, %c0_i32_0 : i32, i32
  }
  func.func @transform_7(%arg0: i32) -> (i32, i32) {
    %c0_i32 = arith.constant 0 : i32
    %c0_i32_0 = arith.constant 0 : i32
    return %c0_i32, %arg0 : i32, i32
  }
}

</mosaic_0001>

<llo_original>
// kernel: tpu_custom_call.1
$region0: #{tpu_custom_call.1}
  #allocation0 [shape = 'u32[]', space=smem, size = 0x4, offset = 0x4, fixed_abs, tag = 'smem constant byte address 0x4 - core index']
  #allocation1 [shape = 'u32[144,128]{1,0:T(1,128)}', space=vmem, size = 0x12000, scoped, tag = 'internal scratch']
  %s0 = inlined_call_operand.vmem [shape: f32[8,32], index: 0, kind: input, shape index: {}]
  %s1 = inlined_call_operand.vmem [shape: f32[8,32], index: 1, kind: input, shape index: {}]
  %s2 = inlined_call_operand.hbm [shape: f32[64,64], index: 2, kind: input, shape index: {}]
  %s3 = inlined_call_operand.vmem [shape: f32[32,16], index: 3, kind: input, shape index: {}]
  %s4 = inlined_call_operand.vmem [shape: f32[8,16], index: 4, kind: input, shape index: {}]
  %s5 = inlined_call_operand.vmem [shape: f32[8,1], index: 5, kind: input, shape index: {}]
  %s6 = inlined_call_operand.vmem [shape: f32[8,128], index: 6, kind: input, shape index: {}]
  %s7 = inlined_call_operand.hbm [shape: f32[8,8], index: 7, kind: output, shape index: {}]
  %s8 = sld [smem:[#allocation0]]
  $region42: #{tpu_custom_call.1} parent=0
    _
  %s10 = ssub.s32 1, %s8
  %s11 = scalar_select 0, %s10, %s8
  $region1: #{tpu_custom_call.1} parent=0
    #allocation2 [shape = 'u8[32768]{0}', space=vmem, size = 0x8000, scoped, tag = 'input window, operand 2, single buffered']
    #allocation3 [shape = 's32[1]{0}', space=sflag, size = 0x4, scoped, tag = 'scoped memory for tpu_custom_call.1']
    #allocation4 [shape = 's32[1]{0}', space=sflag, size = 0x4, scoped, tag = 'scoped memory for tpu_custom_call.1']
    #allocation5 [shape = 'u8[4096]{0}', space=vmem, size = 0x1000, scoped, tag = 'output window, operand 0, single buffered']
    %12 = vsyncpa [#allocation3], 0
    %13 = vsyncpa [#allocation4], 0
    // Predicated region
    $region2: #{tpu_custom_call.1} parent=1 // pred_check
      _
    $region3: #{tpu_custom_call.1} parent=1 // pred_check_branch
      %15 = sbr.rel (0) target = $region5
    $region4: #{tpu_custom_call.1} parent=1 // pred_region
      _
    $region5: #{tpu_custom_call.1} parent=1 // pred_fallthru
      _
    // Predicated region
    $region6: #{tpu_custom_call.1} parent=1 // pred_check
      _
    $region7: #{tpu_custom_call.1} parent=1 // pred_check_branch
      %17 = sbr.rel (0) target = $region9
    $region8: #{tpu_custom_call.1} parent=1 // pred_region
      _
    $region9: #{tpu_custom_call.1} parent=1 // pred_fallthru
      _
    // Predicated region
    $region10: #{tpu_custom_call.1} parent=1 // pred_check
      _
    $region11: #{tpu_custom_call.1} parent=1 // pred_check_branch
      %19 = sbr.rel (0) target = $region13
    $region12: #{tpu_custom_call.1} parent=1 // pred_region
      %s21 = ssub.s32 1024, 1024
      %22 = vsyncadd [#allocation3], %s21
      %s23 = sshll.u32 [#allocation2], 4
      %s24 = int_to_ptr.vmem [resolvable:$true] %s23
      %29 = dma.hbm_to_vmem [thread:$0]  %s2, 1024, %s24, [#allocation3], 128, 128, 8
    $region13: #{tpu_custom_call.1} parent=1 // pred_fallthru
      _
    // Predicated region
    $region14: #{tpu_custom_call.1} parent=1 // pred_check
      _
    $region15: #{tpu_custom_call.1} parent=1 // pred_check_branch
      %31 = sbr.rel (0) target = $region17
    $region16: #{tpu_custom_call.1} parent=1 // pred_region
      _
    $region17: #{tpu_custom_call.1} parent=1 // pred_fallthru
      _
    // Predicated region
    $region18: #{tpu_custom_call.1} parent=1 // pred_check
      _
    $region19: #{tpu_custom_call.1} parent=1 // pred_check_branch
      %33 = sbr.rel (0) target = $region21
    $region20: #{tpu_custom_call.1} parent=1 // pred_region
      _
    $region21: #{tpu_custom_call.1} parent=1 // pred_fallthru
      _
    // Predicated region
    $region22: #{tpu_custom_call.1} parent=1 // pred_check
      _
    $region23: #{tpu_custom_call.1} parent=1 // pred_check_branch
      %35 = sbr.rel (0) target = $region25
    $region24: #{tpu_custom_call.1} parent=1 // pred_region
      _
    $region25: #{tpu_custom_call.1} parent=1 // pred_fallthru
      _
    // Predicated region
    $region26: #{tpu_custom_call.1} parent=1 // pred_check
      _
    $region27: #{tpu_custom_call.1} parent=1 // pred_check_branch
      %37 = sbr.rel (0) target = $region29
    $region28: #{tpu_custom_call.1} parent=1 // pred_region
      _
    $region29: #{tpu_custom_call.1} parent=1 // pred_fallthru
      _
    // Predicated region
    $region30: #{tpu_custom_call.1} parent=1 // pred_check
      _
    $region31: #{tpu_custom_call.1} parent=1 // pred_check_branch
      %39 = sbr.rel (0) target = $region33
    $region32: #{tpu_custom_call.1} parent=1 // pred_region
      %40 = dma.done [#allocation3], 1024
    $region33: #{tpu_custom_call.1} parent=1 // pred_fallthru
      _
    %v41 = vld [vmem:[%s0] sm:$0xff]
    %v42 = vld [vmem:[%s1] sm:$0xff]
    %v43 = vld [vmem:[#allocation2] sm:$0xff]
    %v44 = vld [vmem:[#allocation2 + $0x8] sm:$0xff]
    %v45 = vld [vmem:[#allocation2 + $0x10] sm:$0xff]
    %v46 = vld [vmem:[#allocation2 + $0x18] sm:$0xff]
    %v47 = vld [vmem:[#allocation2 + $0x20] sm:$0xff]
    %v48 = vld [vmem:[#allocation2 + $0x28] sm:$0xff]
    %v49 = vld [vmem:[#allocation2 + $0x30] sm:$0xff]
    %v50 = vld [vmem:[#allocation2 + $0x38] sm:$0xff]
    %v51 = vld [vmem:[%s6] sm:$0xff]
    %vm52 = vcmask 261120
    %v54 = vsel %vm52, %v42, 0
    %56 = vmatprep.subr.mxu0 0.0
    %57 = vmatpush1.msra.mxu0 0.0
    %58 = vmatprep.subr.mxu0 0.0
    %59 = vmatpush1.msra.mxu0 0.0
    %60 = vmatprep.subr.mxu0 0.0
    %61 = vmatpush1.msra.mxu0 0.0
    %62 = vmatprep.subr.mxu0 0.0
    %63 = vmatpush1.msra.mxu0 0.0
    %64 = vmatprep.subr.mxu0 0.0
    %65 = vmatpush1.msra.mxu0 0.0
    %66 = vmatprep.subr.mxu0 0.0
    %67 = vmatpush1.msra.mxu0 0.0
    %68 = vmatprep.subr.mxu0 0.0
    %69 = vmatpush1.msra.mxu0 0.0
    %70 = vmatprep.subr.mxu0 0.0
    %71 = vmatpush1.msra.mxu0 0.0
    %72 = vmatprep.subr.mxu0 0.0
    %73 = vmatpush1.msra.mxu0 0.0
    %74 = vmatprep.subr.mxu0 0.0
    %75 = vmatpush1.msra.mxu0 0.0
    %76 = vmatprep.subr.mxu0 0.0
    %77 = vmatpush1.msra.mxu0 0.0
    %78 = vmatprep.subr.mxu0 0.0
    %79 = vmatpush1.msra.mxu0 0.0
    %80 = vmatprep.subr.mxu0 0.0
    %81 = vmatpush1.msra.mxu0 %v50
    %82 = vmatprep.subr.mxu0 0.0
    %83 = vmatpush1.msra.mxu0 %v49
    %84 = vmatprep.subr.mxu0 0.0
    %85 = vmatpush1.msra.mxu0 %v48
    %86 = vmatprep.subr.mxu0 0.0
    %87 = vmatpush1.msra.mxu0 %v47
    %88 = vmatprep.subr.mxu0 0.0
    %89 = vmatpush2.msra.mxu0 0.0
    %90 = vmatprep.subr.mxu0 0.0
    %91 = vmatpush2.msra.mxu0 0.0
    %92 = vmatprep.subr.mxu0 0.0
    %93 = vmatpush2.msra.mxu0 0.0
    %94 = vmatprep.subr.mxu0 0.0
    %95 = vmatpush2.msra.mxu0 0.0
    %96 = vmatprep.subr.mxu0 0.0
    %97 = vmatpush2.msra.mxu0 0.0
    %98 = vmatprep.subr.mxu0 0.0
    %99 = vmatpush2.msra.mxu0 0.0
    %100 = vmatprep.subr.mxu0 0.0
    %101 = vmatpush2.msra.mxu0 0.0
    %102 = vmatprep.subr.mxu0 0.0
    %103 = vmatpush2.msra.mxu0 0.0
    %104 = vmatprep.subr.mxu0 0.0
    %105 = vmatpush2.msra.mxu0 0.0
    %106 = vmatprep.subr.mxu0 0.0
    %107 = vmatpush2.msra.mxu0 0.0
    %108 = vmatprep.subr.mxu0 0.0
    %109 = vmatpush2.msra.mxu0 0.0
    %110 = vmatprep.subr.mxu0 0.0
    %111 = vmatpush2.msra.mxu0 0.0
    %112 = vmatprep.subr.mxu0 0.0
    %113 = vmatpush2.msra.mxu0 0.0
    %114 = vmatprep.subr.mxu0 0.0
    %115 = vmatpush2.msra.mxu0 0.0
    %116 = vmatprep.subr.mxu0 0.0
    %117 = vmatpush2.msra.mxu0 0.0
    %118 = vmatprep.subr.mxu0 0.0
    %119 = vmatpush2.msra.mxu0 0.0
    %120 = vmatprep.mubr.f32.mxu0 0.0
    %121 = vmatmul.mubr.f32.gmra.mxu0 %v54
    %v122 = vpop.f32.mrf.mxu0
    %v123 = vadd.f32 0.0, %v122
    %v124 = vpop.f32.mrf.mxu0
    %125 = vdwg.mxu0
    %v127 = vsel %vm52, %v41, 0
    %129 = vmatprep.subr.mxu0 0.0
    %130 = vmatpush1.msra.mxu0 0.0
    %131 = vmatprep.subr.mxu0 0.0
    %132 = vmatpush1.msra.mxu0 0.0
    %133 = vmatprep.subr.mxu0 0.0
    %134 = vmatpush1.msra.mxu0 0.0
    %135 = vmatprep.subr.mxu0 0.0
    %136 = vmatpush1.msra.mxu0 0.0
    %137 = vmatprep.subr.mxu0 0.0
    %138 = vmatpush1.msra.mxu0 0.0
    %139 = vmatprep.subr.mxu0 0.0
    %140 = vmatpush1.msra.mxu0 0.0
    %141 = vmatprep.subr.mxu0 0.0
    %142 = vmatpush1.msra.mxu0 0.0
    %143 = vmatprep.subr.mxu0 0.0
    %144 = vmatpush1.msra.mxu0 0.0
    %145 = vmatprep.subr.mxu0 0.0
    %146 = vmatpush1.msra.mxu0 0.0
    %147 = vmatprep.subr.mxu0 0.0
    %148 = vmatpush1.msra.mxu0 0.0
    %149 = vmatprep.subr.mxu0 0.0
    %150 = vmatpush1.msra.mxu0 0.0
    %151 = vmatprep.subr.mxu0 0.0
    %152 = vmatpush1.msra.mxu0 0.0
    %153 = vmatprep.subr.mxu0 0.0
    %154 = vmatpush1.msra.mxu0 %v46
    %155 = vmatprep.subr.mxu0 0.0
    %156 = vmatpush1.msra.mxu0 %v45
    %157 = vmatprep.subr.mxu0 0.0
    %158 = vmatpush1.msra.mxu0 %v44
    %159 = vmatprep.subr.mxu0 0.0
    %160 = vmatpush1.msra.mxu0 %v43
    %161 = vmatprep.subr.mxu0 0.0
    %162 = vmatpush2.msra.mxu0 0.0
    %163 = vmatprep.subr.mxu0 0.0
    %164 = vmatpush2.msra.mxu0 0.0
    %165 = vmatprep.subr.mxu0 0.0
    %166 = vmatpush2.msra.mxu0 0.0
    %167 = vmatprep.subr.mxu0 0.0
    %168 = vmatpush2.msra.mxu0 0.0
    %169 = vmatprep.subr.mxu0 0.0
    %170 = vmatpush2.msra.mxu0 0.0
    %171 = vmatprep.subr.mxu0 0.0
    %172 = vmatpush2.msra.mxu0 0.0
    %173 = vmatprep.subr.mxu0 0.0
    %174 = vmatpush2.msra.mxu0 0.0
    %175 = vmatprep.subr.mxu0 0.0
    %176 = vmatpush2.msra.mxu0 0.0
    %177 = vmatprep.subr.mxu0 0.0
    %178 = vmatpush2.msra.mxu0 0.0
    %179 = vmatprep.subr.mxu0 0.0
    %180 = vmatpush2.msra.mxu0 0.0
    %181 = vmatprep.subr.mxu0 0.0
    %182 = vmatpush2.msra.mxu0 0.0
    %183 = vmatprep.subr.mxu0 0.0
    %184 = vmatpush2.msra.mxu0 0.0
    %185 = vmatprep.subr.mxu0 0.0
    %186 = vmatpush2.msra.mxu0 0.0
    %187 = vmatprep.subr.mxu0 0.0
    %188 = vmatpush2.msra.mxu0 0.0
    %189 = vmatprep.subr.mxu0 0.0
    %190 = vmatpush2.msra.mxu0 0.0
    %191 = vmatprep.subr.mxu0 0.0
    %192 = vmatpush2.msra.mxu0 0.0
    %193 = vmatprep.mubr.f32.mxu0 0.0
    %194 = vmatmul.mubr.f32.gmra.mxu0 %v127
    %v195 = vpop.f32.mrf.mxu0
    %v196 = vadd.f32 %v123, %v195
    %v197 = vpop.f32.mrf.mxu0
    %198 = vdwg.mxu0
    %v199 = vlaneseq
    %v200 = vshrl.u32 %v199, 7
    %v201 = vsub.s32 0, %v200
    %v202 = vrot.slane %v51, %v201
    %v203 = vadd.f32 %v196, %v202
    %v204 = vmul.f32 %v203, %v42
    %v205 = vsel %vm52, %v204, 0.0
    %206 = vadd.xlane.f32.xlu0 %v205
    %v207 = vpop.xlane.xlu0 %206
    %v208 = vlaneseq
    %v209 = vshrl.u32 %v208, 7
    %v210 = vsub.s32 1, %v209
    %v211 = vrot.slane %v51, %v210
    %v212 = vmul.f32 %v207, %v211
    %214 = vrot.lane.b32.xlu0 %v212, 32
    %v215 = vpop.permute.xlu0 %214
    %v217 = vadd.f32 %v196, %v215
    %v218 = vlaneseq
    %v219 = vshrl.u32 %v218, 7
    %v220 = vsub.s32 2, %v219
    %v221 = vrot.slane %v51, %v220
    %223 = vrot.lane.b32.xlu0 %v221, 32
    %v224 = vpop.permute.xlu0 %223
    %v226 = vadd.f32 %v217, %v224
    %v227 = vmax.f32 %v226, 0.0
    %v228 = vld [vmem:[%s3] sm:$0xff]
    %v229 = vld [vmem:[%s3 + $0x8] sm:$0xff]
    %v230 = vld [vmem:[%s3 + $0x10] sm:$0xff]
    %v231 = vld [vmem:[%s3 + $0x18] sm:$0xff]
    %v232 = vlaneseq
    %v233 = vshrl.u32 %v232, 7
    %v234 = vsub.s32 3, %v233
    %v235 = vrot.slane %v51, %v234
    %237 = vrot.lane.b32.xlu0 %v227, 96
    %v238 = vpop.permute.xlu0 %237
    %v239 = vsel %vm52, %v238, 0
    %241 = vmatprep.subr.mxu0 0.0
    %242 = vmatpush1.msra.mxu0 0.0
    %243 = vmatprep.subr.mxu0 0.0
    %244 = vmatpush1.msra.mxu0 0.0
    %245 = vmatprep.subr.mxu0 0.0
    %246 = vmatpush1.msra.mxu0 0.0
    %247 = vmatprep.subr.mxu0 0.0
    %248 = vmatpush1.msra.mxu0 0.0
    %249 = vmatprep.subr.mxu0 0.0
    %250 = vmatpush1.msra.mxu0 0.0
    %251 = vmatprep.subr.mxu0 0.0
    %252 = vmatpush1.msra.mxu0 0.0
    %253 = vmatprep.subr.mxu0 0.0
    %254 = vmatpush1.msra.mxu0 0.0
    %255 = vmatprep.subr.mxu0 0.0
    %256 = vmatpush1.msra.mxu0 0.0
    %257 = vmatprep.subr.mxu0 0.0
    %258 = vmatpush1.msra.mxu0 0.0
    %259 = vmatprep.subr.mxu0 0.0
    %260 = vmatpush1.msra.mxu0 0.0
    %261 = vmatprep.subr.mxu0 0.0
    %262 = vmatpush1.msra.mxu0 0.0
    %263 = vmatprep.subr.mxu0 0.0
    %264 = vmatpush1.msra.mxu0 0.0
    %265 = vmatprep.subr.mxu0 0.0
    %266 = vmatpush1.msra.mxu0 %v231
    %267 = vmatprep.subr.mxu0 0.0
    %268 = vmatpush1.msra.mxu0 %v230
    %269 = vmatprep.subr.mxu0 0.0
    %270 = vmatpush1.msra.mxu0 %v229
    %271 = vmatprep.subr.mxu0 0.0
    %272 = vmatpush1.msra.mxu0 %v228
    %273 = vmatprep.subr.mxu0 0.0
    %274 = vmatpush2.msra.mxu0 0.0
    %275 = vmatprep.subr.mxu0 0.0
    %276 = vmatpush2.msra.mxu0 0.0
    %277 = vmatprep.subr.mxu0 0.0
    %278 = vmatpush2.msra.mxu0 0.0
    %279 = vmatprep.subr.mxu0 0.0
    %280 = vmatpush2.msra.mxu0 0.0
    %281 = vmatprep.subr.mxu0 0.0
    %282 = vmatpush2.msra.mxu0 0.0
    %283 = vmatprep.subr.mxu0 0.0
    %284 = vmatpush2.msra.mxu0 0.0
    %285 = vmatprep.subr.mxu0 0.0
    %286 = vmatpush2.msra.mxu0 0.0
    %287 = vmatprep.subr.mxu0 0.0
    %288 = vmatpush2.msra.mxu0 0.0
    %289 = vmatprep.subr.mxu0 0.0
    %290 = vmatpush2.msra.mxu0 0.0
    %291 = vmatprep.subr.mxu0 0.0
    %292 = vmatpush2.msra.mxu0 0.0
    %293 = vmatprep.subr.mxu0 0.0
    %294 = vmatpush2.msra.mxu0 0.0
    %295 = vmatprep.subr.mxu0 0.0
    %296 = vmatpush2.msra.mxu0 0.0
    %297 = vmatprep.subr.mxu0 0.0
    %298 = vmatpush2.msra.mxu0 0.0
    %299 = vmatprep.subr.mxu0 0.0
    %300 = vmatpush2.msra.mxu0 0.0
    %301 = vmatprep.subr.mxu0 0.0
    %302 = vmatpush2.msra.mxu0 0.0
    %303 = vmatprep.subr.mxu0 0.0
    %304 = vmatpush2.msra.mxu0 0.0
    %305 = vmatprep.mubr.f32.mxu0 0.0
    %306 = vmatmul.mubr.f32.gmra.mxu0 %v239
    %v307 = vpop.f32.mrf.mxu0
    %v308 = vadd.f32 %v235, %v307
    %v309 = vpop.f32.mrf.mxu0
    %310 = vdwg.mxu0
    %v311 = vmax.f32 %v308, 0.0
    %v312 = vld [vmem:[%s4] sm:$0xff]
    %v313 = vld [vmem:[%s5] sm:$0xff]
    %315 = vset.pattern.permute.xlu0 0
    %316 = vperm.xlu0 %315, %v313
    %v317 = vpop.permute.xlu0 %316
    %vm319 = vcmask 130048
    %v321 = vsel %vm319, %v312, 0
    %v324 = vsel %vm319, %v311, 0
    %326 = vmatprep.subr.mxu0 0.0
    %327 = vmatpush1.xpose.msra.mxu0 0.0
    %328 = vmatprep.subr.mxu0 0.0
    %329 = vmatpush1.xpose.msra.mxu0 0.0
    %330 = vmatprep.subr.mxu0 0.0
    %331 = vmatpush1.xpose.msra.mxu0 0.0
    %332 = vmatprep.subr.mxu0 0.0
    %333 = vmatpush1.xpose.msra.mxu0 0.0
    %334 = vmatprep.subr.mxu0 0.0
    %335 = vmatpush1.xpose.msra.mxu0 0.0
    %336 = vmatprep.subr.mxu0 0.0
    %337 = vmatpush1.xpose.msra.mxu0 0.0
    %338 = vmatprep.subr.mxu0 0.0
    %339 = vmatpush1.xpose.msra.mxu0 0.0
    %340 = vmatprep.subr.mxu0 0.0
    %341 = vmatpush1.xpose.msra.mxu0 0.0
    %342 = vmatprep.subr.mxu0 0.0
    %343 = vmatpush1.xpose.msra.mxu0 0.0
    %344 = vmatprep.subr.mxu0 0.0
    %345 = vmatpush1.xpose.msra.mxu0 0.0
    %346 = vmatprep.subr.mxu0 0.0
    %347 = vmatpush1.xpose.msra.mxu0 0.0
    %348 = vmatprep.subr.mxu0 0.0
    %349 = vmatpush1.xpose.msra.mxu0 0.0
    %350 = vmatprep.subr.mxu0 0.0
    %351 = vmatpush1.xpose.msra.mxu0 0.0
    %352 = vmatprep.subr.mxu0 0.0
    %353 = vmatpush1.xpose.msra.mxu0 0.0
    %354 = vmatprep.subr.mxu0 0.0
    %355 = vmatpush1.xpose.msra.mxu0 0.0
    %356 = vmatprep.subr.mxu0 0.0
    %357 = vmatpush1.xpose.msra.mxu0 %v324
    %358 = vmatprep.subr.mxu0 0.0
    %359 = vmatpush2.xpose.msra.mxu0 0.0
    %360 = vmatprep.subr.mxu0 0.0
    %361 = vmatpush2.xpose.msra.mxu0 0.0
    %362 = vmatprep.subr.mxu0 0.0
    %363 = vmatpush2.xpose.msra.mxu0 0.0
    %364 = vmatprep.subr.mxu0 0.0
    %365 = vmatpush2.xpose.msra.mxu0 0.0
    %366 = vmatprep.subr.mxu0 0.0
    %367 = vmatpush2.xpose.msra.mxu0 0.0
    %368 = vmatprep.subr.mxu0 0.0
    %369 = vmatpush2.xpose.msra.mxu0 0.0
    %370 = vmatprep.subr.mxu0 0.0
    %371 = vmatpush2.xpose.msra.mxu0 0.0
    %372 = vmatprep.subr.mxu0 0.0
    %373 = vmatpush2.xpose.msra.mxu0 0.0
    %374 = vmatprep.subr.mxu0 0.0
    %375 = vmatpush2.xpose.msra.mxu0 0.0
    %376 = vmatprep.subr.mxu0 0.0
    %377 = vmatpush2.xpose.msra.mxu0 0.0
    %378 = vmatprep.subr.mxu0 0.0
    %379 = vmatpush2.xpose.msra.mxu0 0.0
    %380 = vmatprep.subr.mxu0 0.0
    %381 = vmatpush2.xpose.msra.mxu0 0.0
    %382 = vmatprep.subr.mxu0 0.0
    %383 = vmatpush2.xpose.msra.mxu0 0.0
    %384 = vmatprep.subr.mxu0 0.0
    %385 = vmatpush2.xpose.msra.mxu0 0.0
    %386 = vmatprep.subr.mxu0 0.0
    %387 = vmatpush2.xpose.msra.mxu0 0.0
    %388 = vmatprep.subr.mxu0 0.0
    %389 = vmatpush2.xpose.msra.mxu0 0.0
    %390 = vmatprep.mubr.f32.mxu0 0.0
    %391 = vmatmul.mubr.f32.gmra.mxu0 %v321
    %v392 = vpop.f32.mrf.mxu0
    %v393 = vadd.f32 %v317, %v392
    %v394 = vpop.f32.mrf.mxu0
    %395 = vdwg.mxu0
    %vm396 = vcmask 64512
    %397 = vst.msk [vmem:[#allocation5] sm:$0xff] %vm396, %v393
    // Predicated region
    $region34: #{tpu_custom_call.1} parent=1 // pred_check
      _
    $region35: #{tpu_custom_call.1} parent=1 // pred_check_branch
      %399 = sbr.rel (0) target = $region37
    $region36: #{tpu_custom_call.1} parent=1 // pred_region
      %s401 = ssub.s32 128, 128
      %402 = vsyncadd [#allocation4], %s401
      %s404 = sshll.u32 [#allocation5], 4
      %s405 = int_to_ptr.vmem [resolvable:$true] %s404
      %407 = dma.vmem_to_hbm [thread:$0]  %s405, 128, %s7, [#allocation4]
    $region37: #{tpu_custom_call.1} parent=1 // pred_fallthru
      _
    // Predicated region
    $region38: #{tpu_custom_call.1} parent=1 // pred_check
      _
    $region39: #{tpu_custom_call.1} parent=1 // pred_check_branch
      %409 = sbr.rel (0) target = $region41
    $region40: #{tpu_custom_call.1} parent=1 // pred_region
      %410 = dma.done [#allocation4], 128
    $region41: #{tpu_custom_call.1} parent=1 // pred_fallthru
      _
    %411 = vsyncpa [#allocation3], 1
    %412 = vsyncpa [#allocation4], 1

</llo_original>
